<compile_context>
chip_gen: v5e
topology: v5e:2x2
jax: 0.10.0
libtpu: 0.0.40
codegen_flags: <defaults>
</compile_context>

<pallas_src>
import jax
import jax.numpy as jnp
from jax import lax
from jax.experimental import pallas as pl
from jax.experimental.pallas import tpu as pltpu

KSIZE = 3      # module defaults: kernel_size=3, stride=1, padding=1
LANES = 128    # TPU vreg lane width


def _round_up(x, m):
    return (x + m - 1) // m * m


def _lane_multiple(c):
    # v6e/v7x MXU is 2x256x256: pad genuinely wide layers to 256 so matmul K/N fill
    # the array; keep 128 for narrow layers (native on v5e, avoids DMA inflation).
    return 256 if c >= 256 else LANES


def dwsep_kernel(xm_ref, xh_ref, dww_ref, pww_ref, pwb_ref, o_ref):
    """One (batch, H-tile) slab per grid step.

    xm_ref : (1, TH, W+2, Cp)   body rows of the zero-padded NHWC input
    xh_ref : (1, 2,  W+2, Cp)   the two padded rows directly below the body (halo)
    dww_ref: (3, 3, Cp) f32     depthwise taps (per channel, VPU)
    pww_ref: (Cp, Co)           pointwise weights in the MXU operand dtype (bf16 default)
    pwb_ref: (1, Co) f32        pointwise bias WITH the depthwise bias folded in
    o_ref  : (1, TH, W, Co)     output slab (lane-dense: Co % 128 == 0)
    """
    TH = o_ref.shape[1]
    W = o_ref.shape[2]
    f32 = jnp.float32

    # Hoisted cast (no-op for f32 activations).  No full-window concat: only the
    # 4-row tail stitch (body rows TH-2..TH-1 + the 2 halo rows) is materialized.
    # TODO(synk): for bf16 activations on v6e/v7x the taps could stay in bf16 on the VPU.
    xb = xm_ref[0].astype(f32)                               # (TH, W+2, Cp)
    xh = xh_ref[0].astype(f32)                               # (2,  W+2, Cp)
    xt = jnp.concatenate([xb[TH - 2:TH], xh], axis=0)        # (4,  W+2, Cp)

    w = dww_ref[...].astype(f32)                             # (3, 3, Cp)

    def depthwise(win, nrows):
        # Row (ky) shifts are slices on the 3rd-from-last axis (cheap re-addressing).
        # The ky-sum is done on UNSHIFTED columns; only the three ky-summed partials
        # get the column (kx) sublane shift -> no pre-shifted window copies.
        # Depthwise bias is folded into pwb in the wrapper (no bias broadcast here).
        acc = None
        for kx in range(KSIZE):
            part = (win[0:nrows]         * w[0, kx]
                    + win[1:nrows + 1]   * w[1, kx]
                    + win[2:nrows + 2]   * w[2, kx])          # (nrows, W+2, Cp) f32
            part = part[:, kx:kx + W, :]                      # (nrows, W,   Cp)
            acc = part if acc is None else acc + part
        return acc

    pww = pww_ref[...]                                        # MXU operand (bf16 default)
    pwb = pwb_ref[...].astype(f32)                            # (1, Co)
    mxu_dt = pww.dtype

    def pointwise(acc, nrows):
        # 1x1 conv == channel matmul on the MXU (K=Cp, N=Co, lane-aligned);
        # bf16 operands, f32 accumulation.  No VMEM scratch staging.
        out = jnp.dot(acc.reshape(nrows * W, -1).astype(mxu_dt), pww,
                      preferred_element_type=jnp.float32)
        out = out + pwb
        return out.reshape(1, nrows, W, -1).astype(o_ref.dtype)

    n_top = TH - 2          # static (trace-time) split: bulk rows need body only,
    if n_top > 0:           # the last 2 rows need the halo.
        o_ref[:, 0:n_top, :, :] = pointwise(depthwise(xb, n_top), n_top)
    o_ref[:, n_top:TH, :, :] = pointwise(depthwise(xt, 2), 2)


def _vmem_bytes(tile_h, W, Cp, Co, in_isz, out_isz, mxu_isz):
    body = tile_h * (W + 2) * Cp * in_isz
    halo = 2 * (W + 2) * Cp * in_isz
    outb = tile_h * W * Co * out_isz
    params = KSIZE * KSIZE * Cp * 4 + Cp * Co * mxu_isz + Co * 4
    pipelined = 2 * (body + halo + outb + params)             # Pallas double-buffers
    # in-kernel f32 temporaries: 3 ky-summed partials + acc + matmul result (rough bound)
    temps = ((KSIZE + 1) * tile_h * (W + 2) * Cp + tile_h * W * Co) * 4
    return pipelined + temps


def _pick_tile_h(N, H, W, Cp, Co, in_isz, out_isz, mxu_isz, vmem_budget):
    h_cap = _round_up(H, 2)
    if N == 1 and H >= 4:
        # keep >= 2 H-tiles so both v7x TensorCores get a 'parallel' grid step
        h_cap = min(h_cap, _round_up((H + 1) // 2, 2))
    th = 2
    while th < h_cap and th * W < 1024:       # grow M to amortize per-step overhead
        nxt = min(th * 2, h_cap)
        if _vmem_bytes(nxt, W, Cp, Co, in_isz, out_isz, mxu_isz) > vmem_budget:
            break
        th = nxt
    return th


def depthwise_separable_conv(x_nchw, dw_w, dw_b, pw_w, pw_b, *,
                             tile_h=None, mxu_dtype=jnp.bfloat16):
    """x_nchw: (N, Cin, H, W); dw_w: (Cin,1,3,3); dw_b: (Cin,);
       pw_w: (Cout, Cin, 1, 1); pw_b: (Cout,).  Returns (N, Cout, H, W)."""
    N, Cin, H, W = x_nchw.shape
    Cout = pw_w.shape[0]
    Cp = _round_up(Cin, _lane_multiple(Cin))      # padded in-channels  (lanes / matmul K)
    Co = _round_up(Cout, _lane_multiple(Cout))    # padded out-channels (lanes / matmul N)

    in_isz = jnp.dtype(x_nchw.dtype).itemsize
    mxu_isz = jnp.dtype(mxu_dtype).itemsize

    # VMEM-aware tiling: v7x has 64 MiB/TC, v5e/v6e have 128 MiB.
    try:
        vmem_cap = int(getattr(pltpu.get_tpu_info(), "vmem_capacity_bytes", 64 << 20))
    except Exception:
        vmem_cap = 64 << 20
    if tile_h is None:
        tile_h = _pick_tile_h(N, H, W, Cp, Co, in_isz, in_isz, mxu_isz, vmem_cap // 3)
    else:
        assert isinstance(tile_h, int) and tile_h >= 2 and tile_h % 2 == 0, (
            "tile_h must be an even int >= 2 (halo BlockSpec indexes at (h+1)*tile_h/2)")
    Hp = _round_up(H, tile_h)
    n_h = Hp // tile_h
    half_th = tile_h // 2

    # --- layout glue: ONE fused HBM pass (NCHW->NHWC transpose + all zero pads) ---
    # TODO(synk): in a stacked network keep activations NHWC / channel-padded between
    # layers so this transpose+pad, the output slice+transpose, and the Co/Cout
    # writeback inflation disappear.
    x_nhwc = jnp.transpose(x_nchw, (0, 2, 3, 1))
    x_pad = jnp.pad(x_nhwc,
                    ((0, 0), (1, 1 + (Hp - H)), (1, 1), (0, Cp - Cin)))  # (N,Hp+2,W+2,Cp)

    # Parameter re-layout (tiny, one-off).  Depthwise taps stay f32 (VPU); pointwise
    # weights go to the MXU operand dtype; depthwise bias is folded through the
    # pointwise layer: pwb' = pwb + pww^T dwb (exact up to fp reassociation).
    dww = jnp.pad(jnp.transpose(dw_w[:, 0, :, :], (1, 2, 0)).astype(jnp.float32),
                  ((0, 0), (0, 0), (0, Cp - Cin)))                        # (3, 3, Cp)
    pw_mat = pw_w[:, :, 0, 0].astype(jnp.float32)                         # (Cout, Cin)
    pww = jnp.pad(pw_mat.T, ((0, Cp - Cin), (0, Co - Cout))).astype(mxu_dtype)  # (Cp, Co)
    pwb_eff = pw_b.astype(jnp.float32) + pw_mat @ dw_b.astype(jnp.float32)
    pwb = jnp.pad(pwb_eff, (0, Co - Cout)).reshape(1, Co)                 # (1, Co) f32

    # Scoped-VMEM limit from the actual per-step requirement (not a blanket 48 MiB).
    est = _vmem_bytes(tile_h, W, Cp, Co, in_isz, in_isz, mxu_isz)
    vmem_limit = int(min(max(2 * est, 16 << 20), max(vmem_cap - (8 << 20), 16 << 20)))

    cost = pl.CostEstimate(
        flops=int(2 * N * Hp * W * Cp * (KSIZE * KSIZE + Co)),
        transcendentals=0,
        bytes_accessed=int(N * n_h * (tile_h + 2) * (W + 2) * Cp * in_isz   # body + halo
                           + N * Hp * W * Co * in_isz                       # output
                           + dww.size * 4 + pww.size * mxu_isz + pwb.size * 4))

    out_padded = pl.pallas_call(
        dwsep_kernel,
        out_shape=jax.ShapeDtypeStruct((N, Hp, W, Co), x_nchw.dtype),
        grid_spec=pltpu.PrefetchScalarGridSpec(
            num_scalar_prefetch=0,
            grid=(N, n_h),
            in_specs=[
                # body rows: padded rows [h*TH, h*TH + TH)
                pl.BlockSpec((1, tile_h, W + 2, Cp), lambda n, h: (n, h, 0, 0)),
                # 2-row halo directly below the body: padded rows [(h+1)*TH, (h+1)*TH+2)
                # (deepen with pipeline_mode=pl.Buffered(3) if profiling shows exposed
                #  input DMA for very small per-step compute)
                pl.BlockSpec((1, 2, W + 2, Cp),
                             lambda n, h: (n, (h + 1) * half_th, 0, 0)),
                pl.BlockSpec((KSIZE, KSIZE, Cp), lambda n, h: (0, 0, 0)),
                pl.BlockSpec((Cp, Co), lambda n, h: (0, 0)),
                pl.BlockSpec((1, Co), lambda n, h: (0, 0)),
            ],
            out_specs=pl.BlockSpec((1, tile_h, W, Co), lambda n, h: (n, h, 0, 0)),
        ),
        compiler_params=pltpu.CompilerParams(
            dimension_semantics=("parallel", "parallel"),
            vmem_limit_bytes=vmem_limit,
        ),
        cost_estimate=cost,
    )(x_pad, x_pad, dww, pww, pwb)

    # Strip channel / bottom-row padding and go back to NCHW (PyTorch interface).
    out = out_padded[:, :H, :, :Cout]
    return jnp.transpose(out, (0, 3, 1, 2))


def reference_nchw(x, dw_w, dw_b, pw_w, pw_b):
    """Pure-JAX reference mirroring the PyTorch module (NCHW, OIHW weights)."""
    Cin = x.shape[1]
    y = lax.conv_general_dilated(
        x, dw_w, window_strides=(1, 1), padding=((1, 1), (1, 1)),
        feature_group_count=Cin,
        dimension_numbers=("NCHW", "OIHW", "NCHW"))
    y = y + dw_b.reshape(1, -1, 1, 1)
    z = lax.conv_general_dilated(
        y, pw_w, window_strides=(1, 1), padding=((0, 0), (0, 0)),
        dimension_numbers=("NCHW", "OIHW", "NCHW"))
    z = z + pw_b.reshape(1, -1, 1, 1)
    return z


if __name__ == "__main__":
    # Small deterministic setup: batch=2, in_channels=4, out_channels=8, spatial=16x16.
    N, Cin, Cout, H, W = 2, 4, 8, 16, 16
    key = jax.random.PRNGKey(0)
    k_x, kdw, kdb, kpw, kpb = jax.random.split(key, 5)

    x = jax.random.normal(k_x, (N, Cin, H, W), dtype=jnp.float32)
    # Parameter shapes match nn.Conv2d: depthwise (Cin,1,3,3), pointwise (Cout,Cin,1,1).
    dw_w = jax.random.normal(kdw, (Cin, 1, KSIZE, KSIZE), dtype=jnp.float32) * 0.1
    dw_b = jax.random.normal(kdb, (Cin,), dtype=jnp.float32) * 0.1
    pw_w = jax.random.normal(kpw, (Cout, Cin, 1, 1), dtype=jnp.float32) * 0.1
    pw_b = jax.random.normal(kpb, (Cout,), dtype=jnp.float32) * 0.1

    ref = reference_nchw(x, dw_w, dw_b, pw_w, pw_b)

    # (1) Default fast path: bf16 MXU operands, f32 accumulate.  tile_h=8 -> grid (2,2)
    #     exercises the H-tiling + halo path.  Tolerance reflects bf16 matmul rounding.
    out = jax.block_until_ready(
        depthwise_separable_conv(x, dw_w, dw_b, pw_w, pw_b, tile_h=8))
    assert out.shape == (N, Cout, H, W)
    assert jnp.allclose(out, ref, atol=1e-2, rtol=1e-2), "bf16-MXU path mismatch"

    # (2) Bit-tight check of the tiling / halo / bias-folding with an f32 MXU path.
    out_f32 = jax.block_until_ready(
        depthwise_separable_conv(x, dw_w, dw_b, pw_w, pw_b, tile_h=8,
                                 mxu_dtype=jnp.float32))
    assert jnp.allclose(out_f32, ref, atol=1e-5, rtol=1e-5), "f32 path mismatch vs ref"

    # (3) Auto-picked tile (single H-tile: halo rows come from the bottom zero pad).
    out_auto = jax.block_until_ready(
        depthwise_separable_conv(x, dw_w, dw_b, pw_w, pw_b))
    assert jnp.allclose(out_auto, ref, atol=1e-2, rtol=1e-2), "auto-tile path mismatch"

    print("KERNEL_OK")
</pallas_src>

<mosaic_0001>
module attributes {stable_mosaic.version = 11 : i64} {
  func.func @dwsep_kernel(%arg0: i32, %arg1: i32, %arg2: memref<1x8x18x128xf32, #tpu.memory_space<vmem>>, %arg3: memref<1x2x18x128xf32, #tpu.memory_space<vmem>>, %arg4: memref<3x3x128xf32, #tpu.memory_space<vmem>>, %arg5: memref<128x128xbf16, #tpu.memory_space<vmem>>, %arg6: memref<1x128xf32, #tpu.memory_space<vmem>>, %arg7: memref<1x8x16x128xf32, #tpu.memory_space<vmem>>) attributes {dimension_semantics = [#tpu.dimension_semantics<parallel>, #tpu.dimension_semantics<parallel>], iteration_bounds = array<i64: 2, 2>, scalar_prefetch = 0 : i64, scratch_operands = 0 : i64, tpu.core_type = #tpu.core_type<tc>, window_params = [{transform_indices = @transform_0, window_bounds = array<i64: 1, 8, 18, 128>}, {transform_indices = @transform_1, window_bounds = array<i64: 1, 2, 18, 128>}, {pipeline_mode = #tpu.pipeline_mode<synchronous>, transform_indices = @transform_2, window_bounds = array<i64: 3, 3, 128>}, {pipeline_mode = #tpu.pipeline_mode<synchronous>, transform_indices = @transform_3, window_bounds = array<i64: 128, 128>}, {pipeline_mode = #tpu.pipeline_mode<synchronous>, transform_indices = @transform_4, window_bounds = array<i64: 1, 128>}, {transform_indices = @transform_5, window_bounds = array<i64: 1, 8, 16, 128>}]} {
    %c0 = arith.constant 0 : index
    %c0_0 = arith.constant 0 : index
    %c0_1 = arith.constant 0 : index
    %c0_2 = arith.constant 0 : index
    %0 = vector.load %arg2[%c0, %c0_0, %c0_1, %c0_2] : memref<1x8x18x128xf32, #tpu.memory_space<vmem>>, vector<1x8x18x128xf32>
    %1 = vector.shape_cast %0 : vector<1x8x18x128xf32> to vector<8x18x128xf32>
    %c0_3 = arith.constant 0 : index
    %c0_4 = arith.constant 0 : index
    %c0_5 = arith.constant 0 : index
    %c0_6 = arith.constant 0 : index
    %2 = vector.load %arg3[%c0_3, %c0_4, %c0_5, %c0_6] : memref<1x2x18x128xf32, #tpu.memory_space<vmem>>, vector<1x2x18x128xf32>
    %3 = vector.shape_cast %2 : vector<1x2x18x128xf32> to vector<2x18x128xf32>
    %4 = vector.extract_strided_slice %1 {offsets = [6, 0, 0], sizes = [2, 18, 128], strides = [1, 1, 1]} : vector<8x18x128xf32> to vector<2x18x128xf32>
    %5 = tpu.concatenate %4, %3 in 0 : vector<2x18x128xf32>, vector<2x18x128xf32> -> vector<4x18x128xf32>
    %c0_7 = arith.constant 0 : index
    %c0_8 = arith.constant 0 : index
    %c0_9 = arith.constant 0 : index
    %6 = vector.load %arg4[%c0_7, %c0_8, %c0_9] : memref<3x3x128xf32, #tpu.memory_space<vmem>>, vector<3x3x128xf32>
    %c0_10 = arith.constant 0 : index
    %c0_11 = arith.constant 0 : index
    %7 = vector.load %arg5[%c0_10, %c0_11] : memref<128x128xbf16, #tpu.memory_space<vmem>>, vector<128x128xbf16>
    %c0_12 = arith.constant 0 : index
    %c0_13 = arith.constant 0 : index
    %8 = vector.load %arg6[%c0_12, %c0_13] : memref<1x128xf32, #tpu.memory_space<vmem>>, vector<1x128xf32>
    %9 = vector.extract_strided_slice %1 {offsets = [0, 0, 0], sizes = [6, 18, 128], strides = [1, 1, 1]} : vector<8x18x128xf32> to vector<6x18x128xf32>
    %10 = vector.extract_strided_slice %6 {offsets = [0, 0, 0], sizes = [1, 1, 128], strides = [1, 1, 1]} : vector<3x3x128xf32> to vector<1x1x128xf32>
    %11 = vector.shape_cast %10 : vector<1x1x128xf32> to vector<128xf32>
    %12 = vector.shape_cast %11 : vector<128xf32> to vector<1x1x128xf32>
    %13 = vector.broadcast %12 : vector<1x1x128xf32> to vector<6x18x128xf32>
    %14 = arith.mulf %9, %13 : vector<6x18x128xf32>
    %15 = vector.extract_strided_slice %1 {offsets = [1, 0, 0], sizes = [6, 18, 128], strides = [1, 1, 1]} : vector<8x18x128xf32> to vector<6x18x128xf32>
    %16 = vector.extract_strided_slice %6 {offsets = [1, 0, 0], sizes = [1, 1, 128], strides = [1, 1, 1]} : vector<3x3x128xf32> to vector<1x1x128xf32>
    %17 = vector.shape_cast %16 : vector<1x1x128xf32> to vector<128xf32>
    %18 = vector.shape_cast %17 : vector<128xf32> to vector<1x1x128xf32>
    %19 = vector.broadcast %18 : vector<1x1x128xf32> to vector<6x18x128xf32>
    %20 = arith.mulf %15, %19 : vector<6x18x128xf32>
    %21 = arith.addf %14, %20 : vector<6x18x128xf32>
    %22 = vector.extract_strided_slice %1 {offsets = [2, 0, 0], sizes = [6, 18, 128], strides = [1, 1, 1]} : vector<8x18x128xf32> to vector<6x18x128xf32>
    %23 = vector.extract_strided_slice %6 {offsets = [2, 0, 0], sizes = [1, 1, 128], strides = [1, 1, 1]} : vector<3x3x128xf32> to vector<1x1x128xf32>
    %24 = vector.shape_cast %23 : vector<1x1x128xf32> to vector<128xf32>
    %25 = vector.shape_cast %24 : vector<128xf32> to vector<1x1x128xf32>
    %26 = vector.broadcast %25 : vector<1x1x128xf32> to vector<6x18x128xf32>
    %27 = arith.mulf %22, %26 : vector<6x18x128xf32>
    %28 = arith.addf %21, %27 : vector<6x18x128xf32>
    %29 = vector.extract_strided_slice %28 {offsets = [0, 0, 0], sizes = [6, 16, 128], strides = [1, 1, 1]} : vector<6x18x128xf32> to vector<6x16x128xf32>
    %30 = vector.extract_strided_slice %1 {offsets = [0, 0, 0], sizes = [6, 18, 128], strides = [1, 1, 1]} : vector<8x18x128xf32> to vector<6x18x128xf32>
    %31 = vector.extract_strided_slice %6 {offsets = [0, 1, 0], sizes = [1, 1, 128], strides = [1, 1, 1]} : vector<3x3x128xf32> to vector<1x1x128xf32>
    %32 = vector.shape_cast %31 : vector<1x1x128xf32> to vector<128xf32>
    %33 = vector.shape_cast %32 : vector<128xf32> to vector<1x1x128xf32>
    %34 = vector.broadcast %33 : vector<1x1x128xf32> to vector<6x18x128xf32>
    %35 = arith.mulf %30, %34 : vector<6x18x128xf32>
    %36 = vector.extract_strided_slice %1 {offsets = [1, 0, 0], sizes = [6, 18, 128], strides = [1, 1, 1]} : vector<8x18x128xf32> to vector<6x18x128xf32>
    %37 = vector.extract_strided_slice %6 {offsets = [1, 1, 0], sizes = [1, 1, 128], strides = [1, 1, 1]} : vector<3x3x128xf32> to vector<1x1x128xf32>
    %38 = vector.shape_cast %37 : vector<1x1x128xf32> to vector<128xf32>
    %39 = vector.shape_cast %38 : vector<128xf32> to vector<1x1x128xf32>
    %40 = vector.broadcast %39 : vector<1x1x128xf32> to vector<6x18x128xf32>
    %41 = arith.mulf %36, %40 : vector<6x18x128xf32>
    %42 = arith.addf %35, %41 : vector<6x18x128xf32>
    %43 = vector.extract_strided_slice %1 {offsets = [2, 0, 0], sizes = [6, 18, 128], strides = [1, 1, 1]} : vector<8x18x128xf32> to vector<6x18x128xf32>
    %44 = vector.extract_strided_slice %6 {offsets = [2, 1, 0], sizes = [1, 1, 128], strides = [1, 1, 1]} : vector<3x3x128xf32> to vector<1x1x128xf32>
    %45 = vector.shape_cast %44 : vector<1x1x128xf32> to vector<128xf32>
    %46 = vector.shape_cast %45 : vector<128xf32> to vector<1x1x128xf32>
    %47 = vector.broadcast %46 : vector<1x1x128xf32> to vector<6x18x128xf32>
    %48 = arith.mulf %43, %47 : vector<6x18x128xf32>
    %49 = arith.addf %42, %48 : vector<6x18x128xf32>
    %50 = vector.extract_strided_slice %49 {offsets = [0, 1, 0], sizes = [6, 16, 128], strides = [1, 1, 1]} : vector<6x18x128xf32> to vector<6x16x128xf32>
    %51 = arith.addf %29, %50 : vector<6x16x128xf32>
    %52 = vector.extract_strided_slice %1 {offsets = [0, 0, 0], sizes = [6, 18, 128], strides = [1, 1, 1]} : vector<8x18x128xf32> to vector<6x18x128xf32>
    %53 = vector.extract_strided_slice %6 {offsets = [0, 2, 0], sizes = [1, 1, 128], strides = [1, 1, 1]} : vector<3x3x128xf32> to vector<1x1x128xf32>
    %54 = vector.shape_cast %53 : vector<1x1x128xf32> to vector<128xf32>
    %55 = vector.shape_cast %54 : vector<128xf32> to vector<1x1x128xf32>
    %56 = vector.broadcast %55 : vector<1x1x128xf32> to vector<6x18x128xf32>
    %57 = arith.mulf %52, %56 : vector<6x18x128xf32>
    %58 = vector.extract_strided_slice %1 {offsets = [1, 0, 0], sizes = [6, 18, 128], strides = [1, 1, 1]} : vector<8x18x128xf32> to vector<6x18x128xf32>
    %59 = vector.extract_strided_slice %6 {offsets = [1, 2, 0], sizes = [1, 1, 128], strides = [1, 1, 1]} : vector<3x3x128xf32> to vector<1x1x128xf32>
    %60 = vector.shape_cast %59 : vector<1x1x128xf32> to vector<128xf32>
    %61 = vector.shape_cast %60 : vector<128xf32> to vector<1x1x128xf32>
    %62 = vector.broadcast %61 : vector<1x1x128xf32> to vector<6x18x128xf32>
    %63 = arith.mulf %58, %62 : vector<6x18x128xf32>
    %64 = arith.addf %57, %63 : vector<6x18x128xf32>
    %65 = vector.extract_strided_slice %1 {offsets = [2, 0, 0], sizes = [6, 18, 128], strides = [1, 1, 1]} : vector<8x18x128xf32> to vector<6x18x128xf32>
    %66 = vector.extract_strided_slice %6 {offsets = [2, 2, 0], sizes = [1, 1, 128], strides = [1, 1, 1]} : vector<3x3x128xf32> to vector<1x1x128xf32>
    %67 = vector.shape_cast %66 : vector<1x1x128xf32> to vector<128xf32>
    %68 = vector.shape_cast %67 : vector<128xf32> to vector<1x1x128xf32>
    %69 = vector.broadcast %68 : vector<1x1x128xf32> to vector<6x18x128xf32>
    %70 = arith.mulf %65, %69 : vector<6x18x128xf32>
    %71 = arith.addf %64, %70 : vector<6x18x128xf32>
    %72 = vector.extract_strided_slice %71 {offsets = [0, 2, 0], sizes = [6, 16, 128], strides = [1, 1, 1]} : vector<6x18x128xf32> to vector<6x16x128xf32>
    %73 = arith.addf %51, %72 : vector<6x16x128xf32>
    %74 = vector.shape_cast %73 : vector<6x16x128xf32> to vector<96x128xf32>
    %75 = arith.truncf %74 : vector<96x128xf32> to vector<96x128xbf16>
    %cst = arith.constant dense<0.000000e+00> : vector<96x128xf32>
    %76 = tpu.matmul %75, %7, %cst {dimension_numbers = #tpu.dot_dimension_numbers<[1], [0], [0], [1], [0, 0, 1, 1], [], []>} : vector<96x128xbf16>, vector<128x128xbf16>, vector<96x128xf32> -> vector<96x128xf32>
    %77 = vector.broadcast %8 : vector<1x128xf32> to vector<96x128xf32>
    %78 = arith.addf %76, %77 : vector<96x128xf32>
    %79 = vector.shape_cast %78 : vector<96x128xf32> to vector<1x6x16x128xf32>
    %c0_14 = arith.constant 0 : index
    %c0_15 = arith.constant 0 : index
    %c0_16 = arith.constant 0 : index
    %c0_17 = arith.constant 0 : index
    %80 = vector.load %arg7[%c0_14, %c0_15, %c0_16, %c0_17] : memref<1x8x16x128xf32, #tpu.memory_space<vmem>>, vector<1x6x16x128xf32>
    tpu.vector_store %arg7[%c0_14, %c0_15, %c0_16, %c0_17], %79 {strides = array<i32>} : memref<1x8x16x128xf32, #tpu.memory_space<vmem>>, vector<1x6x16x128xf32>,
    %81 = vector.extract_strided_slice %5 {offsets = [0, 0, 0], sizes = [2, 18, 128], strides = [1, 1, 1]} : vector<4x18x128xf32> to vector<2x18x128xf32>
    %82 = vector.extract_strided_slice %6 {offsets = [0, 0, 0], sizes = [1, 1, 128], strides = [1, 1, 1]} : vector<3x3x128xf32> to vector<1x1x128xf32>
    %83 = vector.shape_cast %82 : vector<1x1x128xf32> to vector<128xf32>
    %84 = vector.shape_cast %83 : vector<128xf32> to vector<1x1x128xf32>
    %85 = vector.broadcast %84 : vector<1x1x128xf32> to vector<2x18x128xf32>
    %86 = arith.mulf %81, %85 : vector<2x18x128xf32>
    %87 = vector.extract_strided_slice %5 {offsets = [1, 0, 0], sizes = [2, 18, 128], strides = [1, 1, 1]} : vector<4x18x128xf32> to vector<2x18x128xf32>
    %88 = vector.extract_strided_slice %6 {offsets = [1, 0, 0], sizes = [1, 1, 128], strides = [1, 1, 1]} : vector<3x3x128xf32> to vector<1x1x128xf32>
    %89 = vector.shape_cast %88 : vector<1x1x128xf32> to vector<128xf32>
    %90 = vector.shape_cast %89 : vector<128xf32> to vector<1x1x128xf32>
    %91 = vector.broadcast %90 : vector<1x1x128xf32> to vector<2x18x128xf32>
    %92 = arith.mulf %87, %91 : vector<2x18x128xf32>
    %93 = arith.addf %86, %92 : vector<2x18x128xf32>
    %94 = vector.extract_strided_slice %5 {offsets = [2, 0, 0], sizes = [2, 18, 128], strides = [1, 1, 1]} : vector<4x18x128xf32> to vector<2x18x128xf32>
    %95 = vector.extract_strided_slice %6 {offsets = [2, 0, 0], sizes = [1, 1, 128], strides = [1, 1, 1]} : vector<3x3x128xf32> to vector<1x1x128xf32>
    %96 = vector.shape_cast %95 : vector<1x1x128xf32> to vector<128xf32>
    %97 = vector.shape_cast %96 : vector<128xf32> to vector<1x1x128xf32>
    %98 = vector.broadcast %97 : vector<1x1x128xf32> to vector<2x18x128xf32>
    %99 = arith.mulf %94, %98 : vector<2x18x128xf32>
    %100 = arith.addf %93, %99 : vector<2x18x128xf32>
    %101 = vector.extract_strided_slice %100 {offsets = [0, 0, 0], sizes = [2, 16, 128], strides = [1, 1, 1]} : vector<2x18x128xf32> to vector<2x16x128xf32>
    %102 = vector.extract_strided_slice %5 {offsets = [0, 0, 0], sizes = [2, 18, 128], strides = [1, 1, 1]} : vector<4x18x128xf32> to vector<2x18x128xf32>
    %103 = vector.extract_strided_slice %6 {offsets = [0, 1, 0], sizes = [1, 1, 128], strides = [1, 1, 1]} : vector<3x3x128xf32> to vector<1x1x128xf32>
    %104 = vector.shape_cast %103 : vector<1x1x128xf32> to vector<128xf32>
    %105 = vector.shape_cast %104 : vector<128xf32> to vector<1x1x128xf32>
    %106 = vector.broadcast %105 : vector<1x1x128xf32> to vector<2x18x128xf32>
    %107 = arith.mulf %102, %106 : vector<2x18x128xf32>
    %108 = vector.extract_strided_slice %5 {offsets = [1, 0, 0], sizes = [2, 18, 128], strides = [1, 1, 1]} : vector<4x18x128xf32> to vector<2x18x128xf32>
    %109 = vector.extract_strided_slice %6 {offsets = [1, 1, 0], sizes = [1, 1, 128], strides = [1, 1, 1]} : vector<3x3x128xf32> to vector<1x1x128xf32>
    %110 = vector.shape_cast %109 : vector<1x1x128xf32> to vector<128xf32>
    %111 = vector.shape_cast %110 : vector<128xf32> to vector<1x1x128xf32>
    %112 = vector.broadcast %111 : vector<1x1x128xf32> to vector<2x18x128xf32>
    %113 = arith.mulf %108, %112 : vector<2x18x128xf32>
    %114 = arith.addf %107, %113 : vector<2x18x128xf32>
    %115 = vector.extract_strided_slice %5 {offsets = [2, 0, 0], sizes = [2, 18, 128], strides = [1, 1, 1]} : vector<4x18x128xf32> to vector<2x18x128xf32>
    %116 = vector.extract_strided_slice %6 {offsets = [2, 1, 0], sizes = [1, 1, 128], strides = [1, 1, 1]} : vector<3x3x128xf32> to vector<1x1x128xf32>
    %117 = vector.shape_cast %116 : vector<1x1x128xf32> to vector<128xf32>
    %118 = vector.shape_cast %117 : vector<128xf32> to vector<1x1x128xf32>
    %119 = vector.broadcast %118 : vector<1x1x128xf32> to vector<2x18x128xf32>
    %120 = arith.mulf %115, %119 : vector<2x18x128xf32>
    %121 = arith.addf %114, %120 : vector<2x18x128xf32>
    %122 = vector.extract_strided_slice %121 {offsets = [0, 1, 0], sizes = [2, 16, 128], strides = [1, 1, 1]} : vector<2x18x128xf32> to vector<2x16x128xf32>
    %123 = arith.addf %101, %122 : vector<2x16x128xf32>
    %124 = vector.extract_strided_slice %5 {offsets = [0, 0, 0], sizes = [2, 18, 128], strides = [1, 1, 1]} : vector<4x18x128xf32> to vector<2x18x128xf32>
    %125 = vector.extract_strided_slice %6 {offsets = [0, 2, 0], sizes = [1, 1, 128], strides = [1, 1, 1]} : vector<3x3x128xf32> to vector<1x1x128xf32>
    %126 = vector.shape_cast %125 : vector<1x1x128xf32> to vector<128xf32>
    %127 = vector.shape_cast %126 : vector<128xf32> to vector<1x1x128xf32>
    %128 = vector.broadcast %127 : vector<1x1x128xf32> to vector<2x18x128xf32>
    %129 = arith.mulf %124, %128 : vector<2x18x128xf32>
    %130 = vector.extract_strided_slice %5 {offsets = [1, 0, 0], sizes = [2, 18, 128], strides = [1, 1, 1]} : vector<4x18x128xf32> to vector<2x18x128xf32>
    %131 = vector.extract_strided_slice %6 {offsets = [1, 2, 0], sizes = [1, 1, 128], strides = [1, 1, 1]} : vector<3x3x128xf32> to vector<1x1x128xf32>
    %132 = vector.shape_cast %131 : vector<1x1x128xf32> to vector<128xf32>
    %133 = vector.shape_cast %132 : vector<128xf32> to vector<1x1x128xf32>
    %134 = vector.broadcast %133 : vector<1x1x128xf32> to vector<2x18x128xf32>
    %135 = arith.mulf %130, %134 : vector<2x18x128xf32>
    %136 = arith.addf %129, %135 : vector<2x18x128xf32>
    %137 = vector.extract_strided_slice %5 {offsets = [2, 0, 0], sizes = [2, 18, 128], strides = [1, 1, 1]} : vector<4x18x128xf32> to vector<2x18x128xf32>
    %138 = vector.extract_strided_slice %6 {offsets = [2, 2, 0], sizes = [1, 1, 128], strides = [1, 1, 1]} : vector<3x3x128xf32> to vector<1x1x128xf32>
    %139 = vector.shape_cast %138 : vector<1x1x128xf32> to vector<128xf32>
    %140 = vector.shape_cast %139 : vector<128xf32> to vector<1x1x128xf32>
    %141 = vector.broadcast %140 : vector<1x1x128xf32> to vector<2x18x128xf32>
    %142 = arith.mulf %137, %141 : vector<2x18x128xf32>
    %143 = arith.addf %136, %142 : vector<2x18x128xf32>
    %144 = vector.extract_strided_slice %143 {offsets = [0, 2, 0], sizes = [2, 16, 128], strides = [1, 1, 1]} : vector<2x18x128xf32> to vector<2x16x128xf32>
    %145 = arith.addf %123, %144 : vector<2x16x128xf32>
    %146 = vector.shape_cast %145 : vector<2x16x128xf32> to vector<32x128xf32>
    %147 = arith.truncf %146 : vector<32x128xf32> to vector<32x128xbf16>
    %cst_18 = arith.constant dense<0.000000e+00> : vector<32x128xf32>
    %148 = tpu.matmul %147, %7, %cst_18 {dimension_numbers = #tpu.dot_dimension_numbers<[1], [0], [0], [1], [0, 0, 1, 1], [], []>} : vector<32x128xbf16>, vector<128x128xbf16>, vector<32x128xf32> -> vector<32x128xf32>
    %149 = vector.broadcast %8 : vector<1x128xf32> to vector<32x128xf32>
    %150 = arith.addf %148, %149 : vector<32x128xf32>
    %151 = vector.shape_cast %150 : vector<32x128xf32> to vector<1x2x16x128xf32>
    %c0_19 = arith.constant 0 : index
    %c6 = arith.constant 6 : index
    %c0_20 = arith.constant 0 : index
    %c0_21 = arith.constant 0 : index
    %152 = vector.load %arg7[%c0_19, %c6, %c0_20, %c0_21] : memref<1x8x16x128xf32, #tpu.memory_space<vmem>>, vector<1x2x16x128xf32>
    tpu.vector_store %arg7[%c0_19, %c6, %c0_20, %c0_21], %151 {strides = array<i32>} : memref<1x8x16x128xf32, #tpu.memory_space<vmem>>, vector<1x2x16x128xf32>,
    return
  }
  func.func @transform_0(%arg0: i32, %arg1: i32) -> (i32, i32, i32, i32) {
    %c0_i32 = arith.constant 0 : i32
    %c0_i32_0 = arith.constant 0 : i32
    %c0_i32_1 = arith.constant 0 : i32
    return %arg0, %arg1, %c0_i32, %c0_i32_0 : i32, i32, i32, i32
  }
  func.func @transform_1(%arg0: i32, %arg1: i32) -> (i32, i32, i32, i32) {
    %c1_i32 = arith.constant 1 : i32
    %0 = arith.addi %arg1, %c1_i32 : i32
    %c4_i32 = arith.constant 4 : i32
    %1 = arith.muli %0, %c4_i32 : i32
    %c0_i32 = arith.constant 0 : i32
    %c0_i32_0 = arith.constant 0 : i32
    %c0_i32_1 = arith.constant 0 : i32
    return %arg0, %1, %c0_i32, %c0_i32_0 : i32, i32, i32, i32
  }
  func.func @transform_2(%arg0: i32, %arg1: i32) -> (i32, i32, i32) {
    %c0_i32 = arith.constant 0 : i32
    %c0_i32_0 = arith.constant 0 : i32
    %c0_i32_1 = arith.constant 0 : i32
    %c0_i32_2 = arith.constant 0 : i32
    return %c0_i32, %c0_i32_0, %c0_i32_1 : i32, i32, i32
  }
  func.func @transform_3(%arg0: i32, %arg1: i32) -> (i32, i32) {
    %c0_i32 = arith.constant 0 : i32
    %c0_i32_0 = arith.constant 0 : i32
    %c0_i32_1 = arith.constant 0 : i32
    return %c0_i32, %c0_i32_0 : i32, i32
  }
  func.func @transform_4(%arg0: i32, %arg1: i32) -> (i32, i32) {
    %c0_i32 = arith.constant 0 : i32
    %c0_i32_0 = arith.constant 0 : i32
    %c0_i32_1 = arith.constant 0 : i32
    return %c0_i32, %c0_i32_0 : i32, i32
  }
  func.func @transform_5(%arg0: i32, %arg1: i32) -> (i32, i32, i32, i32) {
    %c0_i32 = arith.constant 0 : i32
    %c0_i32_0 = arith.constant 0 : i32
    %c0_i32_1 = arith.constant 0 : i32
    return %arg0, %arg1, %c0_i32, %c0_i32_0 : i32, i32, i32, i32
  }
}

</mosaic_0001>

<llo_original>
// kernel: tpu_custom_call.1
$region0: #{tpu_custom_call.1}
  #allocation0 [shape = 'u32[]', space=smem, size = 0x4, offset = 0x4, fixed_abs, tag = 'smem constant byte address 0x4 - core index']
  #allocation1 [shape = 'u32[72,128]{1,0:T(1,128)}', space=vmem, size = 0x9000, scoped, tag = 'internal scratch']
  %s0 = inlined_call_operand.vmem [shape: f32[2,18,18,128], index: 0, kind: input, shape index: {}]
  %s1 = inlined_call_operand.vmem [shape: f32[2,18,18,128], index: 1, kind: input, shape index: {}]
  %s2 = inlined_call_operand.vmem [shape: f32[3,3,128], index: 2, kind: input, shape index: {}]
  %s3 = inlined_call_operand.vmem [shape: bf16[128,128], index: 3, kind: input, shape index: {}]
  %s4 = inlined_call_operand.vmem [shape: f32[1,128], index: 4, kind: input, shape index: {}]
  %s5 = inlined_call_operand.hbm [shape: f32[2,16,16,128], index: 5, kind: output, shape index: {}]
  %s6 = sld [smem:[#allocation0]]
  $region53: #{tpu_custom_call.1} parent=0
    _
  %s8 = ssub.s32 1, %s6
  %s9 = scalar_select 0, %s8, %s6
  $region1: #{tpu_custom_call.1} parent=0
    #allocation2 [shape = 'u8[131072]{0}', space=vmem, size = 0x20000, scoped, tag = 'output window, operand 0']
    #allocation3 [shape = 's32[2]{0}', space=sflag, size = 0x8, scoped, tag = 'scoped memory for tpu_custom_call.1']
    %10 = vsyncpa [#allocation3], 0
    %s11 = scalar_lea.sflag [#allocation3], 1
    %12 = vsyncpa %s11, 0
    loop: start=0, step=1, limit=6
    $region2: #{tpu_custom_call.1} parent=1 // loop_pre_header
      _
    $region3: #{tpu_custom_call.1} parent=1 // loop_header
      %s14 = sphi 0, %s18
      %p15 = scmp.ge.s32.totalorder %s14, 6
      %s21 = sphi 0, %s33
      %s22 = sphi 0, %s29
      %s23 = sphi 0, %s21
      %s24 = sphi 0, %s22
      %s25 = sphi 0, %s23
      %s26 = sphi 0, %s24
      %s38 = sphi 0, %s40
      %s41 = sphi 0, %s38
      %s42 = sphi 0, %s41
      %s58 = sphi 0, %s42
      %s70 = sphi 0, %s72
      %s73 = sphi 0, %s70
      %s74 = sphi 0, %s73
      %s90 = sphi 0, %s74
      %s94 = sphi 0, %s94
      %s96 = sphi 0, %s94
      %s97 = sphi 0, %s96
      %s111 = sphi 0, %s97
      %s115 = sphi 0, %s115
      %s117 = sphi 0, %s115
      %s118 = sphi 0, %s117
      %s132 = sphi 0, %s118
      %s136 = sphi 0, %s136
      %s138 = sphi 0, %s136
      %s139 = sphi 0, %s138
      %s153 = sphi 0, %s139
      %s161 = sphi 0, %s163
      %s164 = sphi 0, %s161
      %s165 = sphi 0, %s164
      %s181 = sphi 0, %s165
    $region4: #{tpu_custom_call.1} parent=1 // loop_header_branch
      %17 = sbr.rel (%p15) target = $region8
    $region5: #{tpu_custom_call.1} parent=1 // loop_body
      %s19 = ssub.s32 %s14, 1
      %s20 = ssub.s32 %s14, 2
      %s27 = sadd.s32 1, %s22
      %p28 = scmp.ge.s32.totalorder %s27, 2
      %s29 = scalar_select %p28, 0, %s27
      %s30 = sadd.s32 1, %s21
      %s31 = scalar_select %p28, %s30, %s21
      %p32 = scmp.ge.s32.totalorder %s31, 2
      %s33 = scalar_select %p32, 0, %s31
      %s34 = ssub.s32 %s21, %s33
      %s35 = ssub.s32 %s22, %s29
      %s36 = sor.u32 %s34, %s35
      %p37 = scmp.eq.s32.totalorder %s36, 0
      %s39 = sadd.s32 %s38, 1
      %s40 = scalar_select %p37, %s38, %s39
      %p43 = pneg %p37
      %p44 = scmp.eq.s32.totalorder %s14, 3
      %p45 = por %p43, %p44
      %p46 = scmp.ne.s32.totalorder %s38, %s41
      %p47 = scmp.eq.s32.totalorder %s14, 0
      %p48 = por %p46, %p47
      %p49 = scmp.ne.s32.totalorder %s38, %s41
      %p50 = scmp.eq.s32.totalorder %s19, 3
      %p51 = por %p49, %p50
      %p52 = scmp.ne.s32.totalorder %s41, %s42
      %p53 = scmp.eq.s32.totalorder %s19, 0
      %p54 = por %p52, %p53
      %p55 = scmp.ne.s32.totalorder %s41, %s42
      %p56 = scmp.eq.s32.totalorder %s20, 3
      %p57 = por %p55, %p56
      %p59 = scmp.ne.s32.totalorder %s42, %s58
      %p60 = scmp.eq.s32.totalorder %s20, 0
      %p61 = por %p59, %p60
      %s62 = sadd.s32 %s22, 1
      %s63 = smul.u32 %s62, 4
      %s64 = sadd.s32 %s29, 1
      %s65 = smul.u32 %s64, 4
      %s66 = ssub.s32 %s21, %s33
      %s67 = ssub.s32 %s63, %s65
      %s68 = sor.u32 %s66, %s67
      %p69 = scmp.eq.s32.totalorder %s68, 0
      %s71 = sadd.s32 %s70, 1
      %s72 = scalar_select %p69, %s70, %s71
      %p75 = pneg %p69
      %p76 = scmp.eq.s32.totalorder %s14, 3
      %p77 = por %p75, %p76
      %p78 = scmp.ne.s32.totalorder %s70, %s73
      %p79 = scmp.eq.s32.totalorder %s14, 0
      %p80 = por %p78, %p79
      %p81 = scmp.ne.s32.totalorder %s70, %s73
      %p82 = scmp.eq.s32.totalorder %s19, 3
      %p83 = por %p81, %p82
      %p84 = scmp.ne.s32.totalorder %s73, %s74
      %p85 = scmp.eq.s32.totalorder %s19, 0
      %p86 = por %p84, %p85
      %p87 = scmp.ne.s32.totalorder %s73, %s74
      %p88 = scmp.eq.s32.totalorder %s20, 3
      %p89 = por %p87, %p88
      %p91 = scmp.ne.s32.totalorder %s74, %s90
      %p92 = scmp.eq.s32.totalorder %s20, 0
      %p93 = por %p91, %p92
      %s95 = sadd.s32 %s94, 1
      %p98 = scmp.eq.s32.totalorder %s14, 3
      %p99 = scmp.ne.s32.totalorder %s94, %s96
      %p100 = scmp.eq.s32.totalorder %s14, 0
      %p101 = por %p99, %p100
      %p102 = scmp.ne.s32.totalorder %s94, %s96
      %p103 = scmp.eq.s32.totalorder %s19, 3
      %p104 = por %p102, %p103
      %p105 = scmp.ne.s32.totalorder %s96, %s97
      %p106 = scmp.eq.s32.totalorder %s19, 0
      %p107 = por %p105, %p106
      %p108 = scmp.ne.s32.totalorder %s96, %s97
      %p109 = scmp.eq.s32.totalorder %s20, 3
      %p110 = por %p108, %p109
      %p112 = scmp.ne.s32.totalorder %s97, %s111
      %p113 = scmp.eq.s32.totalorder %s20, 0
      %p114 = por %p112, %p113
      %s116 = sadd.s32 %s115, 1
      %p119 = scmp.eq.s32.totalorder %s14, 3
      %p120 = scmp.ne.s32.totalorder %s115, %s117
      %p121 = scmp.eq.s32.totalorder %s14, 0
      %p122 = por %p120, %p121
      %p123 = scmp.ne.s32.totalorder %s115, %s117
      %p124 = scmp.eq.s32.totalorder %s19, 3
      %p125 = por %p123, %p124
      %p126 = scmp.ne.s32.totalorder %s117, %s118
      %p127 = scmp.eq.s32.totalorder %s19, 0
      %p128 = por %p126, %p127
      %p129 = scmp.ne.s32.totalorder %s117, %s118
      %p130 = scmp.eq.s32.totalorder %s20, 3
      %p131 = por %p129, %p130
      %p133 = scmp.ne.s32.totalorder %s118, %s132
      %p134 = scmp.eq.s32.totalorder %s20, 0
      %p135 = por %p133, %p134
      %s137 = sadd.s32 %s136, 1
      %p140 = scmp.eq.s32.totalorder %s14, 3
      %p141 = scmp.ne.s32.totalorder %s136, %s138
      %p142 = scmp.eq.s32.totalorder %s14, 0
      %p143 = por %p141, %p142
      %p144 = scmp.ne.s32.totalorder %s136, %s138
      %p145 = scmp.eq.s32.totalorder %s19, 3
      %p146 = por %p144, %p145
      %p147 = scmp.ne.s32.totalorder %s138, %s139
      %p148 = scmp.eq.s32.totalorder %s19, 0
      %p149 = por %p147, %p148
      %p150 = scmp.ne.s32.totalorder %s138, %s139
      %p151 = scmp.eq.s32.totalorder %s20, 3
      %p152 = por %p150, %p151
      %p154 = scmp.ne.s32.totalorder %s139, %s153
      %p155 = scmp.eq.s32.totalorder %s20, 0
      %p156 = por %p154, %p155
      %s157 = ssub.s32 %s21, %s33
      %s158 = ssub.s32 %s22, %s29
      %s159 = sor.u32 %s157, %s158
      %p160 = scmp.eq.s32.totalorder %s159, 0
      %s162 = sadd.s32 %s161, 1
      %s163 = scalar_select %p160, %s161, %s162
      %p166 = pneg %p160
      %p167 = scmp.eq.s32.totalorder %s14, 3
      %p168 = por %p166, %p167
      %p169 = scmp.ne.s32.totalorder %s161, %s164
      %p170 = scmp.eq.s32.totalorder %s14, 0
      %p171 = por %p169, %p170
      %p172 = scmp.ne.s32.totalorder %s161, %s164
      %p173 = scmp.eq.s32.totalorder %s19, 3
      %p174 = por %p172, %p173
      %p175 = scmp.ne.s32.totalorder %s164, %s165
      %p176 = scmp.eq.s32.totalorder %s19, 0
      %p177 = por %p175, %p176
      %p178 = scmp.ne.s32.totalorder %s164, %s165
      %p179 = scmp.eq.s32.totalorder %s20, 3
      %p180 = por %p178, %p179
      %p182 = scmp.ne.s32.totalorder %s165, %s181
      %p183 = scmp.eq.s32.totalorder %s20, 0
      %p184 = por %p182, %p183
      %p185 = scmp.le.s32.totalorder 1, %s14
      %p186 = scmp.lt.s32.totalorder %s14, 5
      %p187 = pnand %p185, %p186
      %p188 = pneg %p187
      // Predicated region
      $region9: #{tpu_custom_call.1} parent=5 // pred_check
        _
      $region10: #{tpu_custom_call.1} parent=5 // pred_check_branch
        %190 = sbr.rel (%p187) target = $region12
      $region11: #{tpu_custom_call.1} parent=5 // pred_region
        %s191 = ssub.s32 %s14, 1
        // Predicated region
        $region13: #{tpu_custom_call.1} parent=11 // pred_check
          %p192 = pneg %p107
        $region14: #{tpu_custom_call.1} parent=11 // pred_check_branch
          %194 = sbr.rel (%p192) target = $region16
        $region15: #{tpu_custom_call.1} parent=11 // pred_region
          _
        $region16: #{tpu_custom_call.1} parent=11 // pred_fallthru
          _
        // Predicated region
        $region17: #{tpu_custom_call.1} parent=11 // pred_check
          %p195 = pneg %p128
        $region18: #{tpu_custom_call.1} parent=11 // pred_check_branch
          %197 = sbr.rel (%p195) target = $region20
        $region19: #{tpu_custom_call.1} parent=11 // pred_region
          _
        $region20: #{tpu_custom_call.1} parent=11 // pred_fallthru
          _
        // Predicated region
        $region21: #{tpu_custom_call.1} parent=11 // pred_check
          %p198 = pneg %p149
        $region22: #{tpu_custom_call.1} parent=11 // pred_check_branch
          %200 = sbr.rel (%p198) target = $region24
        $region23: #{tpu_custom_call.1} parent=11 // pred_region
          _
        $region24: #{tpu_custom_call.1} parent=11 // pred_fallthru
          _
      $region12: #{tpu_custom_call.1} parent=5 // pred_fallthru
        _
      %p201 = scmp.lt.s32.totalorder %s14, 4
      // Predicated region
      $region25: #{tpu_custom_call.1} parent=5 // pred_check
        %p202 = pneg %p201
      $region26: #{tpu_custom_call.1} parent=5 // pred_check_branch
        %204 = sbr.rel (%p202) target = $region28
      $region27: #{tpu_custom_call.1} parent=5 // pred_region
        // Predicated region
        $region29: #{tpu_custom_call.1} parent=27 // pred_check
          %p205 = pneg %p48
        $region30: #{tpu_custom_call.1} parent=27 // pred_check_branch
          %207 = sbr.rel (%p205) target = $region32
        $region31: #{tpu_custom_call.1} parent=27 // pred_region
          %s208 = smul.u32 8, %s22
          %s209 = ssub.s32 18, %s208
          %p210 = scmp.lt.s32.totalorder %s209, 8
          %s211 = scalar_select %p210, %s209, 8
          %s212 = smul.u32 8, %s211
          %s213 = smul.u32 %s212, 3
          %p214 = scmp.lt.s32.totalorder %s21, 1
          %s215 = scalar_select %p214, %s21, 1
          %p216 = scmp.lt.s32.totalorder %s208, 17
          %s217 = scalar_select %p216, %s208, 17
          %s218 = smul.addr %s217, 3
          %s219 = smul.addr %s215, 54
          %s220 = sadd.s32 %s218, %s219
          %s221 = smul.addr %s220, 8
          %s222 = scalar_lea.vmem %s0, %s221
          %s223 = smul.u32 8, %s22
          %s224 = ssub.s32 18, %s223
          %p225 = scmp.lt.s32.totalorder %s224, 8
          %s226 = scalar_select %p225, %s224, 8
          %s227 = smul.u32 8, %s226
          %s228 = smul.u32 %s227, 3
        $region32: #{tpu_custom_call.1} parent=27 // pred_fallthru
          _
        // Predicated region
        $region33: #{tpu_custom_call.1} parent=27 // pred_check
          %p229 = pneg %p80
        $region34: #{tpu_custom_call.1} parent=27 // pred_check_branch
          %231 = sbr.rel (%p229) target = $region36
        $region35: #{tpu_custom_call.1} parent=27 // pred_region
          %s232 = sadd.s32 %s22, 1
          %s233 = smul.u32 %s232, 4
          %s234 = smul.u32 2, %s233
          %p235 = scmp.lt.s32.totalorder %s21, 1
          %s236 = scalar_select %p235, %s21, 1
          %p237 = scmp.lt.s32.totalorder %s234, 17
          %s238 = scalar_select %p237, %s234, 17
          %s239 = smul.addr %s238, 3
          %s240 = smul.addr %s236, 54
          %s241 = sadd.s32 %s239, %s240
          %s242 = smul.addr %s241, 8
          %s243 = scalar_lea.vmem %s1, %s242
          %s244 = sadd.s32 %s22, 1
          %s245 = smul.u32 %s244, 4
          %s246 = smul.u32 2, %s245
        $region36: #{tpu_custom_call.1} parent=27 // pred_fallthru
          _
      $region28: #{tpu_custom_call.1} parent=5 // pred_fallthru
        _
      %p247 = scmp.le.s32.totalorder 1, %s14
      %p248 = scmp.lt.s32.totalorder %s14, 5
      %p249 = pnand %p247, %p248
      %p250 = pneg %p249
      // Predicated region
      $region37: #{tpu_custom_call.1} parent=5 // pred_check
        _
      $region38: #{tpu_custom_call.1} parent=5 // pred_check_branch
        %252 = sbr.rel (%p249) target = $region40
      $region39: #{tpu_custom_call.1} parent=5 // pred_region
        %s253 = ssub.s32 %s14, 1
        %s254 = smul.u32 8, %s24
        %s255 = ssub.s32 18, %s254
        %p256 = scmp.lt.s32.totalorder %s255, 8
        %s257 = scalar_select %p256, %s255, 8
        %s258 = smul.u32 8, %s257
        %s259 = smul.u32 %s258, 3
        %p260 = scmp.lt.s32.totalorder %s23, 1
        %s261 = scalar_select %p260, %s23, 1
        %p262 = scmp.lt.s32.totalorder %s254, 17
        %s263 = scalar_select %p262, %s254, 17
        %s264 = smul.addr %s263, 3
        %s265 = smul.addr %s261, 54
        %s266 = sadd.s32 %s264, %s265
        %s267 = smul.addr %s266, 8
        %s268 = scalar_lea.vmem %s0, %s267
        %p269 = pneg %p54
        %p270 = pneg %p51
        %s271 = sadd.s32 %s24, 1
        %s272 = smul.u32 %s271, 4
        %s273 = smul.u32 2, %s272
        %p274 = scmp.lt.s32.totalorder %s23, 1
        %s275 = scalar_select %p274, %s23, 1
        %p276 = scmp.lt.s32.totalorder %s273, 17
        %s277 = scalar_select %p276, %s273, 17
        %s278 = smul.addr %s277, 3
        %s279 = smul.addr %s275, 54
        %s280 = sadd.s32 %s278, %s279
        %s281 = smul.addr %s280, 8
        %s282 = scalar_lea.vmem %s1, %s281
        %p283 = pneg %p86
        %p284 = pneg %p83
        %p285 = pneg %p107
        %p286 = pneg %p104
        %p287 = pneg %p128
        %p288 = pneg %p125
        %p289 = pneg %p149
        %p290 = pneg %p146
        %p291 = pneg %p177
        %p292 = pneg %p174
        %s293 = sand.u32 %s164, 1
        %s294 = scalar_lea.sflag [#allocation3], %s293
        %s295 = sand.u32 %s164, 1
        %s296 = smul.addr %s295, 128
        %s297 = scalar_lea.vmem [#allocation2], %s296
        %s298 = smul.u32 8, %s24
        %s299 = ssub.s32 18, %s298
        %p300 = scmp.lt.s32.totalorder %s299, 8
        %s301 = scalar_select %p300, %s299, 8
        %s302 = smul.u32 8, %s301
        %s303 = smul.u32 %s302, 3
        %p304 = scmp.lt.s32.totalorder %s23, 1
        %s305 = scalar_select %p304, %s23, 1
        %p306 = scmp.lt.s32.totalorder %s298, 17
        %s307 = scalar_select %p306, %s298, 17
        %s308 = smul.addr %s307, 3
        %s309 = smul.addr %s305, 54
        %s310 = sadd.s32 %s308, %s309
        %s311 = smul.addr %s310, 8
        %s312 = scalar_lea.vmem %s0, %s311
        %s313 = smul.u32 8, %s24
        %s314 = ssub.s32 18, %s313
        %p315 = scmp.lt.s32.totalorder %s314, 8
        %s316 = scalar_select %p315, %s314, 8
        %s317 = smul.u32 8, %s316
        %s318 = smul.u32 %s317, 3
        %s319 = sadd.s32 %s24, 1
        %s320 = smul.u32 %s319, 4
        %s321 = smul.u32 2, %s320
        %p322 = scmp.lt.s32.totalorder %s23, 1
        %s323 = scalar_select %p322, %s23, 1
        %p324 = scmp.lt.s32.totalorder %s321, 17
        %s325 = scalar_select %p324, %s321, 17
        %s326 = smul.addr %s325, 3
        %s327 = smul.addr %s323, 54
        %s328 = sadd.s32 %s326, %s327
        %s329 = smul.addr %s328, 8
        %s330 = scalar_lea.vmem %s1, %s329
        %s331 = sadd.s32 %s24, 1
        %s332 = smul.u32 %s331, 4
        %s333 = smul.u32 2, %s332
        %s334 = smul.u32 8, %s24
        %v335 = vld [vmem:[%s312] sm:$0xff]
        %v336 = vld [vmem:[%s312 + $0x8] sm:$0xff]
        %v337 = vld [vmem:[%s312 + $0x10] sm:$0x3]
        %v338 = vld [vmem:[%s312 + $0x18] sm:$0xff]
        %v339 = vld [vmem:[%s312 + $0x20] sm:$0xff]
        %v340 = vld [vmem:[%s312 + $0x28] sm:$0x3]
        %v341 = vld [vmem:[%s312 + $0x30] sm:$0xff]
        %v342 = vld [vmem:[%s312 + $0x38] sm:$0xff]
        %v343 = vld [vmem:[%s312 + $0x40] sm:$0x3]
        %v344 = vld [vmem:[%s312 + $0x48] sm:$0xff]
        %v345 = vld [vmem:[%s312 + $0x50] sm:$0xff]
        %v346 = vld [vmem:[%s312 + $0x58] sm:$0x3]
        %v347 = vld [vmem:[%s312 + $0x60] sm:$0xff]
        %v348 = vld [vmem:[%s312 + $0x68] sm:$0xff]
        %v349 = vld [vmem:[%s312 + $0x70] sm:$0x3]
        %v350 = vld [vmem:[%s312 + $0x78] sm:$0xff]
        %v351 = vld [vmem:[%s312 + $0x80] sm:$0xff]
        %v352 = vld [vmem:[%s312 + $0x88] sm:$0x3]
        %v353 = vld [vmem:[%s312 + $0x90] sm:$0xff]
        %v354 = vld [vmem:[%s312 + $0x98] sm:$0xff]
        %v355 = vld [vmem:[%s312 + $0xa0] sm:$0x3]
        %v356 = vld [vmem:[%s312 + $0xa8] sm:$0xff]
        %v357 = vld [vmem:[%s312 + $0xb0] sm:$0xff]
        %v358 = vld [vmem:[%s312 + $0xb8] sm:$0x3]
        %v359 = vld [vmem:[%s330] sm:$0xff]
        %v360 = vld [vmem:[%s330 + $0x8] sm:$0xff]
        %v361 = vld [vmem:[%s330 + $0x10] sm:$0x3]
        %v362 = vld [vmem:[%s330 + $0x18] sm:$0xff]
        %v363 = vld [vmem:[%s330 + $0x20] sm:$0xff]
        %v364 = vld [vmem:[%s330 + $0x28] sm:$0x3]
        %v365 = vld [vmem:[%s2] sm:$0x7]
        %v366 = vld [vmem:[%s2 + $0x4] sm:$0x7]
        %v367 = vld [vmem:[%s2 + $0x8] sm:$0x7]
        %v368 = vld [vmem:[%s3] sm:$0xf]
        %v369 = vld [vmem:[%s3 + $0x4] sm:$0xf]
        %v370 = vld [vmem:[%s3 + $0x8] sm:$0xf]
        %v371 = vld [vmem:[%s3 + $0xc] sm:$0xf]
        %v372 = vld [vmem:[%s3 + $0x10] sm:$0xf]
        %v373 = vld [vmem:[%s3 + $0x14] sm:$0xf]
        %v374 = vld [vmem:[%s3 + $0x18] sm:$0xf]
        %v375 = vld [vmem:[%s3 + $0x1c] sm:$0xf]
        %v376 = vld [vmem:[%s3 + $0x20] sm:$0xf]
        %v377 = vld [vmem:[%s3 + $0x24] sm:$0xf]
        %v378 = vld [vmem:[%s3 + $0x28] sm:$0xf]
        %v379 = vld [vmem:[%s3 + $0x2c] sm:$0xf]
        %v380 = vld [vmem:[%s3 + $0x30] sm:$0xf]
        %v381 = vld [vmem:[%s3 + $0x34] sm:$0xf]
        %v382 = vld [vmem:[%s3 + $0x38] sm:$0xf]
        %v383 = vld [vmem:[%s3 + $0x3c] sm:$0xf]
        %v384 = vld [vmem:[%s4] sm:$0x1]
        %v385 = vperm.slane %v365, 0
        %v386 = vmul.f32 %v335, %v385
        %v387 = vmul.f32 %v336, %v385
        %v388 = vmul.f32 %v338, %v385
        %v389 = vmul.f32 %v339, %v385
        %v390 = vmul.f32 %v341, %v385
        %v391 = vmul.f32 %v342, %v385
        %v392 = vmul.f32 %v344, %v385
        %v393 = vmul.f32 %v345, %v385
        %v394 = vmul.f32 %v347, %v385
        %v395 = vmul.f32 %v348, %v385
        %v396 = vmul.f32 %v350, %v385
        %v397 = vmul.f32 %v351, %v385
        %v398 = vperm.slane %v366, 0
        %v399 = vmul.f32 %v338, %v398
        %v400 = vmul.f32 %v339, %v398
        %v401 = vmul.f32 %v341, %v398
        %v402 = vmul.f32 %v342, %v398
        %v403 = vmul.f32 %v344, %v398
        %v404 = vmul.f32 %v345, %v398
        %v405 = vmul.f32 %v347, %v398
        %v406 = vmul.f32 %v348, %v398
        %v407 = vmul.f32 %v350, %v398
        %v408 = vmul.f32 %v351, %v398
        %v409 = vmul.f32 %v353, %v398
        %v410 = vmul.f32 %v354, %v398
        %v411 = vadd.f32 %v386, %v399
        %v412 = vadd.f32 %v387, %v400
        %v413 = vadd.f32 %v388, %v401
        %v414 = vadd.f32 %v389, %v402
        %v415 = vadd.f32 %v390, %v403
        %v416 = vadd.f32 %v391, %v404
        %v417 = vadd.f32 %v392, %v405
        %v418 = vadd.f32 %v393, %v406
        %v419 = vadd.f32 %v394, %v407
        %v420 = vadd.f32 %v395, %v408
        %v421 = vadd.f32 %v396, %v409
        %v422 = vadd.f32 %v397, %v410
        %v423 = vperm.slane %v367, 0
        %v424 = vmul.f32 %v341, %v423
        %v425 = vmul.f32 %v342, %v423
        %v426 = vmul.f32 %v344, %v423
        %v427 = vmul.f32 %v345, %v423
        %v428 = vmul.f32 %v347, %v423
        %v429 = vmul.f32 %v348, %v423
        %v430 = vmul.f32 %v350, %v423
        %v431 = vmul.f32 %v351, %v423
        %v432 = vmul.f32 %v353, %v423
        %v433 = vmul.f32 %v354, %v423
        %v434 = vmul.f32 %v356, %v423
        %v435 = vmul.f32 %v357, %v423
        %v436 = vadd.f32 %v411, %v424
        %v437 = vadd.f32 %v412, %v425
        %v438 = vadd.f32 %v413, %v426
        %v439 = vadd.f32 %v414, %v427
        %v440 = vadd.f32 %v415, %v428
        %v441 = vadd.f32 %v416, %v429
        %v442 = vadd.f32 %v417, %v430
        %v443 = vadd.f32 %v418, %v431
        %v444 = vadd.f32 %v419, %v432
        %v445 = vadd.f32 %v420, %v433
        %v446 = vadd.f32 %v421, %v434
        %v447 = vadd.f32 %v422, %v435
        %v448 = vperm.slane %v365, 1
        %v449 = vmul.f32 %v335, %v448
        %v450 = vmul.f32 %v336, %v448
        %v451 = vmul.f32 %v337, %v448
        %v452 = vmul.f32 %v338, %v448
        %v453 = vmul.f32 %v339, %v448
        %v454 = vmul.f32 %v340, %v448
        %v455 = vmul.f32 %v341, %v448
        %v456 = vmul.f32 %v342, %v448
        %v457 = vmul.f32 %v343, %v448
        %v458 = vmul.f32 %v344, %v448
        %v459 = vmul.f32 %v345, %v448
        %v460 = vmul.f32 %v346, %v448
        %v461 = vmul.f32 %v347, %v448
        %v462 = vmul.f32 %v348, %v448
        %v463 = vmul.f32 %v349, %v448
        %v464 = vmul.f32 %v350, %v448
        %v465 = vmul.f32 %v351, %v448
        %v466 = vmul.f32 %v352, %v448
        %v467 = vperm.slane %v366, 1
        %v468 = vmul.f32 %v338, %v467
        %v469 = vmul.f32 %v339, %v467
        %v470 = vmul.f32 %v340, %v467
        %v471 = vmul.f32 %v341, %v467
        %v472 = vmul.f32 %v342, %v467
        %v473 = vmul.f32 %v343, %v467
        %v474 = vmul.f32 %v344, %v467
        %v475 = vmul.f32 %v345, %v467
        %v476 = vmul.f32 %v346, %v467
        %v477 = vmul.f32 %v347, %v467
        %v478 = vmul.f32 %v348, %v467
        %v479 = vmul.f32 %v349, %v467
        %v480 = vmul.f32 %v350, %v467
        %v481 = vmul.f32 %v351, %v467
        %v482 = vmul.f32 %v352, %v467
        %v483 = vmul.f32 %v353, %v467
        %v484 = vmul.f32 %v354, %v467
        %v485 = vmul.f32 %v355, %v467
        %v486 = vadd.f32 %v449, %v468
        %v487 = vadd.f32 %v450, %v469
        %v488 = vadd.f32 %v451, %v470
        %v489 = vadd.f32 %v452, %v471
        %v490 = vadd.f32 %v453, %v472
        %v491 = vadd.f32 %v454, %v473
        %v492 = vadd.f32 %v455, %v474
        %v493 = vadd.f32 %v456, %v475
        %v494 = vadd.f32 %v457, %v476
        %v495 = vadd.f32 %v458, %v477
        %v496 = vadd.f32 %v459, %v478
        %v497 = vadd.f32 %v460, %v479
        %v498 = vadd.f32 %v461, %v480
        %v499 = vadd.f32 %v462, %v481
        %v500 = vadd.f32 %v463, %v482
        %v501 = vadd.f32 %v464, %v483
        %v502 = vadd.f32 %v465, %v484
        %v503 = vadd.f32 %v466, %v485
        %v504 = vperm.slane %v367, 1
        %v505 = vmul.f32 %v341, %v504
        %v506 = vmul.f32 %v342, %v504
        %v507 = vmul.f32 %v343, %v504
        %v508 = vmul.f32 %v344, %v504
        %v509 = vmul.f32 %v345, %v504
        %v510 = vmul.f32 %v346, %v504
        %v511 = vmul.f32 %v347, %v504
        %v512 = vmul.f32 %v348, %v504
        %v513 = vmul.f32 %v349, %v504
        %v514 = vmul.f32 %v350, %v504
        %v515 = vmul.f32 %v351, %v504
        %v516 = vmul.f32 %v352, %v504
        %v517 = vmul.f32 %v353, %v504
        %v518 = vmul.f32 %v354, %v504
        %v519 = vmul.f32 %v355, %v504
        %v520 = vmul.f32 %v356, %v504
        %v521 = vmul.f32 %v357, %v504
        %v522 = vmul.f32 %v358, %v504
        %v523 = vadd.f32 %v486, %v505
        %v524 = vadd.f32 %v487, %v506
        %v525 = vadd.f32 %v488, %v507
        %v526 = vadd.f32 %v489, %v508
        %v527 = vadd.f32 %v490, %v509
        %v528 = vadd.f32 %v491, %v510
        %v529 = vadd.f32 %v492, %v511
        %v530 = vadd.f32 %v493, %v512
        %v531 = vadd.f32 %v494, %v513
        %v532 = vadd.f32 %v495, %v514
        %v533 = vadd.f32 %v496, %v515
        %v534 = vadd.f32 %v497, %v516
        %v535 = vadd.f32 %v498, %v517
        %v536 = vadd.f32 %v499, %v518
        %v537 = vadd.f32 %v500, %v519
        %v538 = vadd.f32 %v501, %v520
        %v539 = vadd.f32 %v502, %v521
        %v540 = vadd.f32 %v503, %v522
        %vm559 = vcmask 1046528
        %v560 = vrot.slane %v523, 1
        %v561 = vrot.slane %v524, 1
        %v562 = vsel %vm559, %v560, %v561
        %v563 = vrot.slane %v525, 1
        %v564 = vsel %vm559, %v561, %v563
        %v565 = vrot.slane %v526, 1
        %v566 = vrot.slane %v527, 1
        %v567 = vsel %vm559, %v565, %v566
        %v568 = vrot.slane %v528, 1
        %v569 = vsel %vm559, %v566, %v568
        %v570 = vrot.slane %v529, 1
        %v571 = vrot.slane %v530, 1
        %v572 = vsel %vm559, %v570, %v571
        %v573 = vrot.slane %v531, 1
        %v574 = vsel %vm559, %v571, %v573
        %v575 = vrot.slane %v532, 1
        %v576 = vrot.slane %v533, 1
        %v577 = vsel %vm559, %v575, %v576
        %v578 = vrot.slane %v534, 1
        %v579 = vsel %vm559, %v576, %v578
        %v580 = vrot.slane %v535, 1
        %v581 = vrot.slane %v536, 1
        %v582 = vsel %vm559, %v580, %v581
        %v583 = vrot.slane %v537, 1
        %v584 = vsel %vm559, %v581, %v583
        %v585 = vrot.slane %v538, 1
        %v586 = vrot.slane %v539, 1
        %v587 = vsel %vm559, %v585, %v586
        %v588 = vrot.slane %v540, 1
        %v589 = vsel %vm559, %v586, %v588
        %v602 = vadd.f32 %v436, %v562
        %v603 = vadd.f32 %v437, %v564
        %v604 = vadd.f32 %v438, %v567
        %v605 = vadd.f32 %v439, %v569
        %v606 = vadd.f32 %v440, %v572
        %v607 = vadd.f32 %v441, %v574
        %v608 = vadd.f32 %v442, %v577
        %v609 = vadd.f32 %v443, %v579
        %v610 = vadd.f32 %v444, %v582
        %v611 = vadd.f32 %v445, %v584
        %v612 = vadd.f32 %v446, %v587
        %v613 = vadd.f32 %v447, %v589
        %v614 = vperm.slane %v365, 2
        %v615 = vmul.f32 %v335, %v614
        %v616 = vmul.f32 %v336, %v614
        %v617 = vmul.f32 %v337, %v614
        %v618 = vmul.f32 %v338, %v614
        %v619 = vmul.f32 %v339, %v614
        %v620 = vmul.f32 %v340, %v614
        %v621 = vmul.f32 %v341, %v614
        %v622 = vmul.f32 %v342, %v614
        %v623 = vmul.f32 %v343, %v614
        %v624 = vmul.f32 %v344, %v614
        %v625 = vmul.f32 %v345, %v614
        %v626 = vmul.f32 %v346, %v614
        %v627 = vmul.f32 %v347, %v614
        %v628 = vmul.f32 %v348, %v614
        %v629 = vmul.f32 %v349, %v614
        %v630 = vmul.f32 %v350, %v614
        %v631 = vmul.f32 %v351, %v614
        %v632 = vmul.f32 %v352, %v614
        %v633 = vperm.slane %v366, 2
        %v634 = vmul.f32 %v338, %v633
        %v635 = vmul.f32 %v339, %v633
        %v636 = vmul.f32 %v340, %v633
        %v637 = vmul.f32 %v341, %v633
        %v638 = vmul.f32 %v342, %v633
        %v639 = vmul.f32 %v343, %v633
        %v640 = vmul.f32 %v344, %v633
        %v641 = vmul.f32 %v345, %v633
        %v642 = vmul.f32 %v346, %v633
        %v643 = vmul.f32 %v347, %v633
        %v644 = vmul.f32 %v348, %v633
        %v645 = vmul.f32 %v349, %v633
        %v646 = vmul.f32 %v350, %v633
        %v647 = vmul.f32 %v351, %v633
        %v648 = vmul.f32 %v352, %v633
        %v649 = vmul.f32 %v353, %v633
        %v650 = vmul.f32 %v354, %v633
        %v651 = vmul.f32 %v355, %v633
        %v652 = vadd.f32 %v615, %v634
        %v653 = vadd.f32 %v616, %v635
        %v654 = vadd.f32 %v617, %v636
        %v655 = vadd.f32 %v618, %v637
        %v656 = vadd.f32 %v619, %v638
        %v657 = vadd.f32 %v620, %v639
        %v658 = vadd.f32 %v621, %v640
        %v659 = vadd.f32 %v622, %v641
        %v660 = vadd.f32 %v623, %v642
        %v661 = vadd.f32 %v624, %v643
        %v662 = vadd.f32 %v625, %v644
        %v663 = vadd.f32 %v626, %v645
        %v664 = vadd.f32 %v627, %v646
        %v665 = vadd.f32 %v628, %v647
        %v666 = vadd.f32 %v629, %v648
        %v667 = vadd.f32 %v630, %v649
        %v668 = vadd.f32 %v631, %v650
        %v669 = vadd.f32 %v632, %v651
        %v670 = vperm.slane %v367, 2
        %v671 = vmul.f32 %v341, %v670
        %v672 = vmul.f32 %v342, %v670
        %v673 = vmul.f32 %v343, %v670
        %v674 = vmul.f32 %v344, %v670
        %v675 = vmul.f32 %v345, %v670
        %v676 = vmul.f32 %v346, %v670
        %v677 = vmul.f32 %v347, %v670
        %v678 = vmul.f32 %v348, %v670
        %v679 = vmul.f32 %v349, %v670
        %v680 = vmul.f32 %v350, %v670
        %v681 = vmul.f32 %v351, %v670
        %v682 = vmul.f32 %v352, %v670
        %v683 = vmul.f32 %v353, %v670
        %v684 = vmul.f32 %v354, %v670
        %v685 = vmul.f32 %v355, %v670
        %v686 = vmul.f32 %v356, %v670
        %v687 = vmul.f32 %v357, %v670
        %v688 = vmul.f32 %v358, %v670
        %v689 = vadd.f32 %v652, %v671
        %v690 = vadd.f32 %v653, %v672
        %v691 = vadd.f32 %v654, %v673
        %v692 = vadd.f32 %v655, %v674
        %v693 = vadd.f32 %v656, %v675
        %v694 = vadd.f32 %v657, %v676
        %v695 = vadd.f32 %v658, %v677
        %v696 = vadd.f32 %v659, %v678
        %v697 = vadd.f32 %v660, %v679
        %v698 = vadd.f32 %v661, %v680
        %v699 = vadd.f32 %v662, %v681
        %v700 = vadd.f32 %v663, %v682
        %v701 = vadd.f32 %v664, %v683
        %v702 = vadd.f32 %v665, %v684
        %v703 = vadd.f32 %v666, %v685
        %v704 = vadd.f32 %v667, %v686
        %v705 = vadd.f32 %v668, %v687
        %v706 = vadd.f32 %v669, %v688
        %vm725 = vcmask 1045504
        %v726 = vrot.slane %v689, 2
        %v727 = vrot.slane %v690, 2
        %v728 = vsel %vm725, %v726, %v727
        %v729 = vrot.slane %v691, 2
        %v730 = vsel %vm725, %v727, %v729
        %v731 = vrot.slane %v692, 2
        %v732 = vrot.slane %v693, 2
        %v733 = vsel %vm725, %v731, %v732
        %v734 = vrot.slane %v694, 2
        %v735 = vsel %vm725, %v732, %v734
        %v736 = vrot.slane %v695, 2
        %v737 = vrot.slane %v696, 2
        %v738 = vsel %vm725, %v736, %v737
        %v739 = vrot.slane %v697, 2
        %v740 = vsel %vm725, %v737, %v739
        %v741 = vrot.slane %v698, 2
        %v742 = vrot.slane %v699, 2
        %v743 = vsel %vm725, %v741, %v742
        %v744 = vrot.slane %v700, 2
        %v745 = vsel %vm725, %v742, %v744
        %v746 = vrot.slane %v701, 2
        %v747 = vrot.slane %v702, 2
        %v748 = vsel %vm725, %v746, %v747
        %v749 = vrot.slane %v703, 2
        %v750 = vsel %vm725, %v747, %v749
        %v751 = vrot.slane %v704, 2
        %v752 = vrot.slane %v705, 2
        %v753 = vsel %vm725, %v751, %v752
        %v754 = vrot.slane %v706, 2
        %v755 = vsel %vm725, %v752, %v754
        %v768 = vadd.f32 %v602, %v728
        %v769 = vadd.f32 %v603, %v730
        %v770 = vadd.f32 %v604, %v733
        %v771 = vadd.f32 %v605, %v735
        %v772 = vadd.f32 %v606, %v738
        %v773 = vadd.f32 %v607, %v740
        %v774 = vadd.f32 %v608, %v743
        %v775 = vadd.f32 %v609, %v745
        %v776 = vadd.f32 %v610, %v748
        %v777 = vadd.f32 %v611, %v750
        %v778 = vadd.f32 %v612, %v753
        %v779 = vadd.f32 %v613, %v755
        %v780 = vpack.c.bf16 %v769, %v768
        %v781 = vpack.c.bf16 %v771, %v770
        %v782 = vpack.c.bf16 %v773, %v772
        %v783 = vpack.c.bf16 %v775, %v774
        %v784 = vpack.c.bf16 %v777, %v776
        %v785 = vpack.c.bf16 %v779, %v778
        %v787 = vperm.slane %v384, 0
        %v805 = vunpack.c.l.b16 %v368
        %v806 = vunpack.c.l.b16 %v369
        %v807 = vunpack.c.l.b16 %v370
        %v808 = vunpack.c.l.b16 %v371
        %v809 = vunpack.c.l.b16 %v372
        %v810 = vunpack.c.l.b16 %v373
        %v811 = vunpack.c.l.b16 %v374
        %v812 = vunpack.c.l.b16 %v375
        %v813 = vunpack.c.l.b16 %v376
        %v814 = vunpack.c.l.b16 %v377
        %v815 = vunpack.c.l.b16 %v378
        %v816 = vunpack.c.l.b16 %v379
        %v817 = vunpack.c.l.b16 %v380
        %v818 = vunpack.c.l.b16 %v381
        %v819 = vunpack.c.l.b16 %v382
        %v820 = vunpack.c.l.b16 %v383
        %v821 = vpack.c.b16 %v806, %v805
        %v822 = vpack.c.b16 %v808, %v807
        %v823 = vpack.c.b16 %v810, %v809
        %v824 = vpack.c.b16 %v812, %v811
        %v825 = vpack.c.b16 %v814, %v813
        %v826 = vpack.c.b16 %v816, %v815
        %v827 = vpack.c.b16 %v818, %v817
        %v828 = vpack.c.b16 %v820, %v819
        %837 = vmatpush.bf16.msra.mxu0 %v828
        %838 = vmatpush.bf16.msra.mxu0 %v827
        %839 = vmatpush.bf16.msra.mxu0 %v826
        %840 = vmatpush.bf16.msra.mxu0 %v825
        %841 = vmatpush.bf16.msra.mxu0 %v824
        %842 = vmatpush.bf16.msra.mxu0 %v823
        %843 = vmatpush.bf16.msra.mxu0 %v822
        %844 = vmatpush.bf16.msra.mxu0 %v821
        %845 = vmatmul.bf16.gmra.mxu0 %v780
        %v846 = vpop.f32.mrf.mxu0
        %v847 = vadd.f32 %v787, %v846
        %v848 = vpop.f32.mrf.mxu0
        %v849 = vadd.f32 %v787, %v848
        %850 = vmatmul.bf16.gmra.mxu0 %v781
        %v851 = vpop.f32.mrf.mxu0
        %v852 = vadd.f32 %v787, %v851
        %v853 = vpop.f32.mrf.mxu0
        %v854 = vadd.f32 %v787, %v853
        %855 = vmatmul.bf16.gmra.mxu0 %v782
        %v856 = vpop.f32.mrf.mxu0
        %v857 = vadd.f32 %v787, %v856
        %v858 = vpop.f32.mrf.mxu0
        %v859 = vadd.f32 %v787, %v858
        %860 = vmatmul.bf16.gmra.mxu0 %v783
        %v861 = vpop.f32.mrf.mxu0
        %v862 = vadd.f32 %v787, %v861
        %v863 = vpop.f32.mrf.mxu0
        %v864 = vadd.f32 %v787, %v863
        %865 = vmatmul.bf16.gmra.mxu0 %v784
        %v866 = vpop.f32.mrf.mxu0
        %v867 = vadd.f32 %v787, %v866
        %v868 = vpop.f32.mrf.mxu0
        %v869 = vadd.f32 %v787, %v868
        %870 = vmatmul.bf16.gmra.mxu0 %v785
        %v871 = vpop.f32.mrf.mxu0
        %v872 = vadd.f32 %v787, %v871
        %v873 = vpop.f32.mrf.mxu0
        %v874 = vadd.f32 %v787, %v873
        %875 = vdwg.mxu0
        %876 = vst [vmem:[%s297] sm:$0xff] %v847
        %877 = vst [vmem:[%s297 + $0x8] sm:$0xff] %v849
        %878 = vst [vmem:[%s297 + $0x10] sm:$0xff] %v852
        %879 = vst [vmem:[%s297 + $0x18] sm:$0xff] %v854
        %880 = vst [vmem:[%s297 + $0x20] sm:$0xff] %v857
        %881 = vst [vmem:[%s297 + $0x28] sm:$0xff] %v859
        %882 = vst [vmem:[%s297 + $0x30] sm:$0xff] %v862
        %883 = vst [vmem:[%s297 + $0x38] sm:$0xff] %v864
        %884 = vst [vmem:[%s297 + $0x40] sm:$0xff] %v867
        %885 = vst [vmem:[%s297 + $0x48] sm:$0xff] %v869
        %886 = vst [vmem:[%s297 + $0x50] sm:$0xff] %v872
        %887 = vst [vmem:[%s297 + $0x58] sm:$0xff] %v874
        %v888 = vmul.f32 %v353, %v385
        %v889 = vmul.f32 %v354, %v385
        %v890 = vmul.f32 %v356, %v385
        %v891 = vmul.f32 %v357, %v385
        %v892 = vmul.f32 %v356, %v398
        %v893 = vmul.f32 %v357, %v398
        %v894 = vmul.f32 %v359, %v398
        %v895 = vmul.f32 %v360, %v398
        %v896 = vadd.f32 %v888, %v892
        %v897 = vadd.f32 %v889, %v893
        %v898 = vadd.f32 %v890, %v894
        %v899 = vadd.f32 %v891, %v895
        %v900 = vmul.f32 %v359, %v423
        %v901 = vmul.f32 %v360, %v423
        %v902 = vmul.f32 %v362, %v423
        %v903 = vmul.f32 %v363, %v423
        %v904 = vadd.f32 %v896, %v900
        %v905 = vadd.f32 %v897, %v901
        %v906 = vadd.f32 %v898, %v902
        %v907 = vadd.f32 %v899, %v903
        %v908 = vmul.f32 %v353, %v448
        %v909 = vmul.f32 %v354, %v448
        %v910 = vmul.f32 %v355, %v448
        %v911 = vmul.f32 %v356, %v448
        %v912 = vmul.f32 %v357, %v448
        %v913 = vmul.f32 %v358, %v448
        %v914 = vmul.f32 %v356, %v467
        %v915 = vmul.f32 %v357, %v467
        %v916 = vmul.f32 %v358, %v467
        %v917 = vmul.f32 %v359, %v467
        %v918 = vmul.f32 %v360, %v467
        %v919 = vmul.f32 %v361, %v467
        %v920 = vadd.f32 %v908, %v914
        %v921 = vadd.f32 %v909, %v915
        %v922 = vadd.f32 %v910, %v916
        %v923 = vadd.f32 %v911, %v917
        %v924 = vadd.f32 %v912, %v918
        %v925 = vadd.f32 %v913, %v919
        %v926 = vmul.f32 %v359, %v504
        %v927 = vmul.f32 %v360, %v504
        %v928 = vmul.f32 %v361, %v504
        %v929 = vmul.f32 %v362, %v504
        %v930 = vmul.f32 %v363, %v504
        %v931 = vmul.f32 %v364, %v504
        %v932 = vadd.f32 %v920, %v926
        %v933 = vadd.f32 %v921, %v927
        %v934 = vadd.f32 %v922, %v928
        %v935 = vadd.f32 %v923, %v929
        %v936 = vadd.f32 %v924, %v930
        %v937 = vadd.f32 %v925, %v931
        %v944 = vrot.slane %v932, 1
        %v945 = vrot.slane %v933, 1
        %v946 = vsel %vm559, %v944, %v945
        %v947 = vrot.slane %v934, 1
        %v948 = vsel %vm559, %v945, %v947
        %v949 = vrot.slane %v935, 1
        %v950 = vrot.slane %v936, 1
        %v951 = vsel %vm559, %v949, %v950
        %v952 = vrot.slane %v937, 1
        %v953 = vsel %vm559, %v950, %v952
        %v958 = vadd.f32 %v904, %v946
        %v959 = vadd.f32 %v905, %v948
        %v960 = vadd.f32 %v906, %v951
        %v961 = vadd.f32 %v907, %v953
        %v962 = vmul.f32 %v353, %v614
        %v963 = vmul.f32 %v354, %v614
        %v964 = vmul.f32 %v355, %v614
        %v965 = vmul.f32 %v356, %v614
        %v966 = vmul.f32 %v357, %v614
        %v967 = vmul.f32 %v358, %v614
        %v968 = vmul.f32 %v356, %v633
        %v969 = vmul.f32 %v357, %v633
        %v970 = vmul.f32 %v358, %v633
        %v971 = vmul.f32 %v359, %v633
        %v972 = vmul.f32 %v360, %v633
        %v973 = vmul.f32 %v361, %v633
        %v974 = vadd.f32 %v962, %v968
        %v975 = vadd.f32 %v963, %v969
        %v976 = vadd.f32 %v964, %v970
        %v977 = vadd.f32 %v965, %v971
        %v978 = vadd.f32 %v966, %v972
        %v979 = vadd.f32 %v967, %v973
        %v980 = vmul.f32 %v359, %v670
        %v981 = vmul.f32 %v360, %v670
        %v982 = vmul.f32 %v361, %v670
        %v983 = vmul.f32 %v362, %v670
        %v984 = vmul.f32 %v363, %v670
        %v985 = vmul.f32 %v364, %v670
        %v986 = vadd.f32 %v974, %v980
        %v987 = vadd.f32 %v975, %v981
        %v988 = vadd.f32 %v976, %v982
        %v989 = vadd.f32 %v977, %v983
        %v990 = vadd.f32 %v978, %v984
        %v991 = vadd.f32 %v979, %v985
        %v998 = vrot.slane %v986, 2
        %v999 = vrot.slane %v987, 2
        %v1000 = vsel %vm725, %v998, %v999
        %v1001 = vrot.slane %v988, 2
        %v1002 = vsel %vm725, %v999, %v1001
        %v1003 = vrot.slane %v989, 2
        %v1004 = vrot.slane %v990, 2
        %v1005 = vsel %vm725, %v1003, %v1004
        %v1006 = vrot.slane %v991, 2
        %v1007 = vsel %vm725, %v1004, %v1006
        %v1012 = vadd.f32 %v958, %v1000
        %v1013 = vadd.f32 %v959, %v1002
        %v1014 = vadd.f32 %v960, %v1005
        %v1015 = vadd.f32 %v961, %v1007
        %v1016 = vpack.c.bf16 %v1013, %v1012
        %v1017 = vpack.c.bf16 %v1015, %v1014
        %1018 = vmatpush.bf16.msra.mxu0 %v828
        %1019 = vmatpush.bf16.msra.mxu0 %v827
        %1020 = vmatpush.bf16.msra.mxu0 %v826
        %1021 = vmatpush.bf16.msra.mxu0 %v825
        %1022 = vmatpush.bf16.msra.mxu0 %v824
        %1023 = vmatpush.bf16.msra.mxu0 %v823
        %1024 = vmatpush.bf16.msra.mxu0 %v822
        %1025 = vmatpush.bf16.msra.mxu0 %v821
        %1026 = vmatmul.bf16.gmra.mxu0 %v1016
        %v1027 = vpop.f32.mrf.mxu0
        %v1028 = vadd.f32 %v787, %v1027
        %v1029 = vpop.f32.mrf.mxu0
        %v1030 = vadd.f32 %v787, %v1029
        %1031 = vmatmul.bf16.gmra.mxu0 %v1017
        %v1032 = vpop.f32.mrf.mxu0
        %v1033 = vadd.f32 %v787, %v1032
        %v1034 = vpop.f32.mrf.mxu0
        %v1035 = vadd.f32 %v787, %v1034
        %1036 = vdwg.mxu0
        %s1037 = scalar_lea.vmem %s297, 96 [#allocation2]
        %1038 = vst [vmem:[%s1037] sm:$0xff] %v1028
        %1039 = vst [vmem:[%s1037 + $0x8] sm:$0xff] %v1030
        %1040 = vst [vmem:[%s1037 + $0x10] sm:$0xff] %v1033
        %1041 = vst [vmem:[%s1037 + $0x18] sm:$0xff] %v1035
        %s1042 = sand.u32 %s164, 1
        %s1043 = scalar_lea.sflag [#allocation3], %s1042
        %s1044 = sand.u32 %s164, 1
        %s1045 = smul.addr %s1044, 128
        %s1046 = scalar_lea.vmem [#allocation2], %s1045
        // Predicated region
        $region41: #{tpu_custom_call.1} parent=39 // pred_check
          %p1047 = pneg %p174
        $region42: #{tpu_custom_call.1} parent=39 // pred_check_branch
          %1049 = sbr.rel (%p1047) target = $region44
        $region43: #{tpu_custom_call.1} parent=39 // pred_region
          %s1050 = smul.u32 8, %s24
          %1052 = vsyncadd %s1043, 0
          %s1053 = smul.addr %s1050, 2
          %s1054 = smul.addr %s23, 32
          %s1055 = sadd.s32 %s1053, %s1054
          %s1056 = smul.addr %s1055, 8
          %s1057 = scalar_lea.hbm %s5, %s1056
          %s1058 = sshll.u32 %s1046, 4
          %s1059 = int_to_ptr.vmem [resolvable:$true] %s1058
          %s1060 = sshll.u32 %s1057, 4
          %s1061 = int_to_ptr.hbm [resolvable:$true] %s1060
          %1066 = dma.vmem_to_hbm [thread:$0]  %s1059, 2048, %s1061, %s1043, 128, 128, 8
        $region44: #{tpu_custom_call.1} parent=39 // pred_fallthru
          _
      $region40: #{tpu_custom_call.1} parent=5 // pred_fallthru
        _
      %p1067 = scmp.le.s32.totalorder 2, %s14
      // Predicated region
      $region45: #{tpu_custom_call.1} parent=5 // pred_check
        %p1068 = pneg %p1067
      $region46: #{tpu_custom_call.1} parent=5 // pred_check_branch
        %1070 = sbr.rel (%p1068) target = $region48
      $region47: #{tpu_custom_call.1} parent=5 // pred_region
        %s1071 = ssub.s32 %s14, 2
        // Predicated region
        $region49: #{tpu_custom_call.1} parent=47 // pred_check
          %p1072 = pneg %p180
        $region50: #{tpu_custom_call.1} parent=47 // pred_check_branch
          %1074 = sbr.rel (%p1072) target = $region52
        $region51: #{tpu_custom_call.1} parent=47 // pred_region
          %s1075 = sand.u32 %s165, 1
          %s1076 = scalar_lea.sflag [#allocation3], %s1075
          %s1077 = sand.u32 %s165, 1
          %s1078 = smul.addr %s1077, 128
          %s1079 = scalar_lea.vmem [#allocation2], %s1078
          %1081 = dma.done %s1076, 2048
        $region52: #{tpu_custom_call.1} parent=47 // pred_fallthru
          _
      $region48: #{tpu_custom_call.1} parent=5 // pred_fallthru
        _
    $region6: #{tpu_custom_call.1} parent=1 // loop_footer
      %s18 = sadd.s32 1, %s14
    $region7: #{tpu_custom_call.1} parent=1 // loop_footer_branch
      %13 = sbr.rel target = $region3
    $region8: #{tpu_custom_call.1} parent=1 // loop_exit
      _
    %1082 = vsyncpa [#allocation3], 1
    %s1083 = scalar_lea.sflag [#allocation3], 1
    %1084 = vsyncpa %s1083, 1

</llo_original>
